<compile_context>
chip_gen: v6e
topology: v6e:2x2x1
jax: 0.10.0
libtpu: 0.0.40
codegen_flags: <defaults>
</compile_context>

<pallas_src>
import math
import functools

import jax
import jax.numpy as jnp
from jax.experimental import pallas as pl
from jax.experimental.pallas import tpu as pltpu


# ----------------------------------------------------------------------------
# Helpers
# ----------------------------------------------------------------------------
def _vmem_limit_bytes():
    """Generation-aware scoped-VMEM limit: 75% of physical, capped at 100 MiB.

    v7x (64 MiB physical)  -> ~48 MiB  (leave headroom for compiler scratch).
    v5e/v6e (128 MiB)      -> 96-100 MiB (default 16/32 MiB is far too small).
    """
    cap = 128 * 1024 * 1024
    try:
        cap = pltpu.get_tpu_info().vmem_capacity_bytes
    except Exception:
        pass
    return int(min(0.75 * cap, 100 * 1024 * 1024))


def _pipeline_mode_supported():
    try:
        pl.BlockSpec((8, 128), lambda i: (0, 0), pipeline_mode=pl.Buffered(1))
        return True
    except Exception:       # older JAX without pipeline_mode on BlockSpec
        return False


_HAS_BUFFERED = _pipeline_mode_supported()


def _const_spec(shape):
    """Full-array BlockSpec with a constant index_map (weights / params).

    Single-buffered: the block never changes across the grid, so depth-2
    double-buffering would only double resident weight VMEM.
    """
    nd = len(shape)
    idx = lambda *_: (0,) * nd
    if _HAS_BUFFERED:
        return pl.BlockSpec(shape, idx, pipeline_mode=pl.Buffered(1))
    return pl.BlockSpec(shape, idx)


def _layer_norm(x, g, b, eps):
    mu = jnp.mean(x, axis=-1, keepdims=True)
    var = jnp.mean((x - mu) * (x - mu), axis=-1, keepdims=True)
    return (x - mu) * jax.lax.rsqrt(var + eps) * g + b


# ----------------------------------------------------------------------------
# Kernel A: packed lane-dense K / V projections (whole sequence, per batch)
# ----------------------------------------------------------------------------
def _kv_proj_kernel(k_in_ref, v_in_ref, wk_ref, wv_ref, bkv_ref,
                    k_out_ref, v_out_ref, *, hk):
    bkv = bkv_ref[...]                                   # (1, h*d_k + h*d_v) f32
    kproj = jnp.dot(k_in_ref[0], wk_ref[...],
                    preferred_element_type=jnp.float32) + bkv[:, :hk]
    vproj = jnp.dot(v_in_ref[0], wv_ref[...],
                    preferred_element_type=jnp.float32) + bkv[:, hk:]
    k_out_ref[0] = kproj.astype(k_out_ref.dtype)         # lane-dense stores
    v_out_ref[0] = vproj.astype(v_out_ref.dtype)


# ----------------------------------------------------------------------------
# Kernel B: per (batch, query block): Q proj + attention + out proj + FFN + LNs
# ----------------------------------------------------------------------------
def _attn_ffn_kernel(q_in_ref, kp_ref, vp_ref,           # (1,TQ,D), (1,S,HK), (1,S,HV)
                     wq_ref, bq_ref,                      # (D,HK) scaled, (1,HK) scaled
                     wo_ref,                              # (HV, D)  original packed layout
                     w1_ref, b1_ref, w2_ref,              # (D,d_ff), (1,d_ff), (d_ff,D)
                     vecd_ref,                            # (6,D): ln1_g,ln1_b,ln2_g,ln2_b,bo,b2
                     o_ref,                               # (1,TQ,D)
                     *, h, d_k, d_v, eps):
    dt = q_in_ref.dtype
    tq = q_in_ref.shape[1]
    s_len = kp_ref.shape[1]

    xq = q_in_ref[0]                                      # (TQ, D) residual base

    # --- lane-dense Q projection (scale already folded into wq/bq) ---
    q_pack = (jnp.dot(xq, wq_ref[...], preferred_element_type=jnp.float32)
              + bq_ref[...]).astype(dt)                   # (TQ, h*d_k)

    # --- head-major views: one reshape+transpose per tensor ---
    q_h = q_pack.reshape(tq, h, d_k).transpose(1, 0, 2)            # (h, TQ, d_k)
    k_h = kp_ref[0].reshape(s_len, h, d_k).transpose(1, 0, 2)      # (h, S,  d_k)
    v_h = vp_ref[0].reshape(s_len, h, d_v).transpose(1, 0, 2)      # (h, S,  d_v)

    # --- head-batched attention; scores bounded to (h, TQ, S) per grid step ---
    s = jnp.einsum('hqd,hkd->hqk', q_h, k_h,
                   preferred_element_type=jnp.float32)             # (h, TQ, S) f32
    s = s - jnp.max(s, axis=-1, keepdims=True)
    p = jnp.exp(s)
    denom = jnp.sum(p, axis=-1, keepdims=True)                     # (h, TQ, 1) f32
    ctx = jnp.einsum('hqk,hkd->hqd', p.astype(dt), v_h,
                     preferred_element_type=jnp.float32)           # (h, TQ, d_v) f32
    ctx = ctx * pl.reciprocal(denom, approx=False)                 # exact softmax

    # --- single output projection: contract over all heads at once (K=h*d_v) ---
    ctx_flat = ctx.transpose(1, 0, 2).reshape(tq, h * d_v).astype(dt)
    y = jnp.dot(ctx_flat, wo_ref[...], preferred_element_type=jnp.float32)
    y = y + xq.astype(jnp.float32) + vecd_ref[4:5, :]              # + residual + b_o

    # --- LayerNorm 1 (f32 stats) ---
    y = _layer_norm(y, vecd_ref[0:1, :], vecd_ref[1:2, :], eps)    # (TQ, D) f32

    # --- position-wise feed forward (MXU inputs in activation dtype) ---
    hdn = jnp.dot(y.astype(dt), w1_ref[...],
                  preferred_element_type=jnp.float32) + b1_ref[...]
    hdn = jnp.maximum(hdn, 0.0).astype(dt)                         # ReLU, (TQ, d_ff)
    ff = jnp.dot(hdn, w2_ref[...],
                 preferred_element_type=jnp.float32) + vecd_ref[5:6, :]

    # --- residual + LayerNorm 2 ---
    z = _layer_norm(y + ff, vecd_ref[2:3, :], vecd_ref[3:4, :], eps)
    o_ref[0] = z.astype(o_ref.dtype)


# ----------------------------------------------------------------------------
# Wrapper
# ----------------------------------------------------------------------------
def encoder_layer(queries, keys, values, params, *, h, d_k, d_v, eps=1e-5, tq=128):
    B, S, D = queries.shape
    dt = queries.dtype
    HK, HV = h * d_k, h * d_v
    d_ff = params["w1"].shape[1]

    assert params["wq"].shape == (D, HK)
    assert params["wk"].shape == (D, HK)
    assert params["wv"].shape == (D, HV)
    assert params["wo"].shape == (HV, D)

    # Query-block size: 128 when it divides S (prod), otherwise the full sequence.
    TQ = min(tq, S)
    if S % TQ != 0:
        TQ = S
    nq = S // TQ

    # ---- host-side (trace-time) repack ----
    scale = 1.0 / math.sqrt(d_k)
    f32 = jnp.float32
    # matmul weights in the activation dtype (run the layer in bf16 for bf16 MXU)
    wq_s = (params["wq"].astype(f32) * scale).astype(dt)    # scale folded into Wq
    wk_c = params["wk"].astype(dt)
    wv_c = params["wv"].astype(dt)
    wo_c = params["wo"].astype(dt)
    w1_c = params["w1"].astype(dt)
    w2_c = params["w2"].astype(dt)
    # biases / LN params stay f32 (added to f32 accumulators)
    bq_s = params["bq"].astype(f32) * scale                  # (1, HK)
    bkv = jnp.concatenate([params["bk"], params["bv"]], axis=-1).astype(f32)  # (1, HK+HV)
    b1 = params["b1"].astype(f32)                             # (1, d_ff)
    vecd = jnp.concatenate(
        [params["ln1_g"], params["ln1_b"], params["ln2_g"], params["ln2_b"],
         params["bo"], params["b2"]], axis=0).astype(f32)     # (6, D)

    vmem_limit = _vmem_limit_bytes()

    # ---- Kernel A: K / V projections for the full sequence ----
    seq_d_spec = pl.BlockSpec((1, S, D), lambda b: (b, 0, 0))
    k_pack, v_pack = pl.pallas_call(
        functools.partial(_kv_proj_kernel, hk=HK),
        out_shape=(jax.ShapeDtypeStruct((B, S, HK), dt),
                   jax.ShapeDtypeStruct((B, S, HV), dt)),
        grid_spec=pltpu.PrefetchScalarGridSpec(
            num_scalar_prefetch=0,
            grid=(B,),
            in_specs=[seq_d_spec, seq_d_spec,
                      _const_spec(wk_c.shape), _const_spec(wv_c.shape),
                      _const_spec(bkv.shape)],
            out_specs=[pl.BlockSpec((1, S, HK), lambda b: (b, 0, 0)),
                       pl.BlockSpec((1, S, HV), lambda b: (b, 0, 0))],
        ),
        compiler_params=pltpu.CompilerParams(
            dimension_semantics=("parallel",),
            vmem_limit_bytes=vmem_limit,
        ),
    )(keys, values, wk_c, wv_c, bkv)

    # ---- Kernel B: per (batch, query block) attention + FFN ----
    kern = functools.partial(_attn_ffn_kernel, h=h, d_k=d_k, d_v=d_v, eps=eps)
    q_block_spec = pl.BlockSpec((1, TQ, D), lambda b, qi: (b, qi, 0))
    kpack_spec = pl.BlockSpec((1, S, HK), lambda b, qi: (b, 0, 0))
    vpack_spec = pl.BlockSpec((1, S, HV), lambda b, qi: (b, 0, 0))

    out = pl.pallas_call(
        kern,
        out_shape=jax.ShapeDtypeStruct((B, S, D), dt),
        grid_spec=pltpu.PrefetchScalarGridSpec(
            num_scalar_prefetch=0,
            grid=(B, nq),
            in_specs=[q_block_spec, kpack_spec, vpack_spec,
                      _const_spec(wq_s.shape), _const_spec(bq_s.shape),
                      _const_spec(wo_c.shape),
                      _const_spec(w1_c.shape), _const_spec(b1.shape),
                      _const_spec(w2_c.shape),
                      _const_spec(vecd.shape)],
            out_specs=pl.BlockSpec((1, TQ, D), lambda b, qi: (b, qi, 0)),
        ),
        compiler_params=pltpu.CompilerParams(
            # batch x query-block both parallel -> v7x's 2 TCs busy even at B=1
            dimension_semantics=("parallel", "parallel"),
            vmem_limit_bytes=vmem_limit,
        ),
    )(queries, k_pack, v_pack, wq_s, bq_s, wo_c, w1_c, b1, w2_c, vecd)
    return out


# ----------------------------------------------------------------------------
# Pure-JAX reference (mirrors the PyTorch forward in eval mode)
# ----------------------------------------------------------------------------
def encoder_layer_ref(queries, keys, values, p, *, h, d_k, d_v, eps=1e-5):
    B, S, D = queries.shape
    q = queries @ p["wq"] + p["bq"]
    k = keys @ p["wk"] + p["bk"]
    v = values @ p["wv"] + p["bv"]
    q = q.reshape(B, S, h, d_k).transpose(0, 2, 1, 3)
    k = k.reshape(B, S, h, d_k).transpose(0, 2, 3, 1)
    v = v.reshape(B, S, h, d_v).transpose(0, 2, 1, 3)
    att = (q @ k) / math.sqrt(d_k)
    att = jax.nn.softmax(att, axis=-1)
    out = (att @ v).transpose(0, 2, 1, 3).reshape(B, S, h * d_v)
    out = out @ p["wo"] + p["bo"]

    def ln(x, g, b):
        mu = x.mean(-1, keepdims=True)
        var = ((x - mu) ** 2).mean(-1, keepdims=True)
        return (x - mu) * jax.lax.rsqrt(var + eps) * g + b

    y = ln(queries + out, p["ln1_g"], p["ln1_b"])
    ff = jnp.maximum(y @ p["w1"] + p["b1"], 0.0) @ p["w2"] + p["b2"]
    return ln(y + ff, p["ln2_g"], p["ln2_b"])


# ----------------------------------------------------------------------------
# Main
# ----------------------------------------------------------------------------
if __name__ == "__main__":
    # small shapes consistent with the module (scaled down from 768/64/12/2048)
    B, S = 2, 8
    d_model, d_k, d_v, h, d_ff = 32, 8, 8, 4, 64

    key = jax.random.PRNGKey(0)
    ks = jax.random.split(key, 12)

    def w(k, shape, scale=0.1):
        return (scale * jax.random.normal(k, shape)).astype(jnp.float32)

    params = {
        "wq": w(ks[0], (d_model, h * d_k)), "bq": w(ks[1], (1, h * d_k)),
        "wk": w(ks[2], (d_model, h * d_k)), "bk": w(ks[3], (1, h * d_k)),
        "wv": w(ks[4], (d_model, h * d_v)), "bv": w(ks[5], (1, h * d_v)),
        "wo": w(ks[6], (h * d_v, d_model)), "bo": w(ks[7], (1, d_model)),
        "ln1_g": jnp.ones((1, d_model), jnp.float32),
        "ln1_b": jnp.zeros((1, d_model), jnp.float32),
        "w1": w(ks[8], (d_model, d_ff)), "b1": w(ks[9], (1, d_ff)),
        "w2": w(ks[10], (d_ff, d_model)), "b2": w(ks[11], (1, d_model)),
        "ln2_g": jnp.ones((1, d_model), jnp.float32),
        "ln2_b": jnp.zeros((1, d_model), jnp.float32),
    }

    x = jax.random.normal(jax.random.PRNGKey(42), (B, S, d_model), jnp.float32)

    ref = encoder_layer_ref(x, x, x, params, h=h, d_k=d_k, d_v=d_v)

    # f32 path: tight parity with the reference (exact softmax reciprocal)
    out = encoder_layer(x, x, x, params, h=h, d_k=d_k, d_v=d_v)
    out = jax.block_until_ready(out)
    assert out.shape == (B, S, d_model)
    err = float(jnp.max(jnp.abs(out - ref)))
    assert jnp.allclose(out, ref, atol=2e-3, rtol=2e-3), err

    # bf16 path: exercises the bf16-weight / bf16-MXU configuration
    x_bf = x.astype(jnp.bfloat16)
    out_bf = encoder_layer(x_bf, x_bf, x_bf, params, h=h, d_k=d_k, d_v=d_v)
    out_bf = jax.block_until_ready(out_bf)
    assert out_bf.shape == (B, S, d_model) and out_bf.dtype == jnp.bfloat16
    err_bf = float(jnp.max(jnp.abs(out_bf.astype(jnp.float32) - ref)))
    assert bool(jnp.isfinite(err_bf)) and err_bf < 0.25, err_bf

    print("KERNEL_OK")
</pallas_src>

<mosaic_0001>
module attributes {stable_mosaic.version = 11 : i64} {
  func.func @_kv_proj_kernel(%arg0: i32, %arg1: memref<1x8x32xf32, #tpu.memory_space<vmem>>, %arg2: memref<1x8x32xf32, #tpu.memory_space<vmem>>, %arg3: memref<32x32xf32, #tpu.memory_space<vmem>>, %arg4: memref<32x32xf32, #tpu.memory_space<vmem>>, %arg5: memref<1x64xf32, #tpu.memory_space<vmem>>, %arg6: memref<1x8x32xf32, #tpu.memory_space<vmem>>, %arg7: memref<1x8x32xf32, #tpu.memory_space<vmem>>) attributes {dimension_semantics = [#tpu.dimension_semantics<parallel>], iteration_bounds = array<i64: 2>, scalar_prefetch = 0 : i64, scratch_operands = 0 : i64, tpu.core_type = #tpu.core_type<tc>, window_params = [{transform_indices = @transform_0, window_bounds = array<i64: 1, 8, 32>}, {transform_indices = @transform_1, window_bounds = array<i64: 1, 8, 32>}, {pipeline_mode = #tpu.pipeline_mode<synchronous>, transform_indices = @transform_2, window_bounds = array<i64: 32, 32>}, {pipeline_mode = #tpu.pipeline_mode<synchronous>, transform_indices = @transform_3, window_bounds = array<i64: 32, 32>}, {pipeline_mode = #tpu.pipeline_mode<synchronous>, transform_indices = @transform_4, window_bounds = array<i64: 1, 64>}, {transform_indices = @transform_5, window_bounds = array<i64: 1, 8, 32>}, {transform_indices = @transform_6, window_bounds = array<i64: 1, 8, 32>}]} {
    %c0 = arith.constant 0 : index
    %c0_0 = arith.constant 0 : index
    %0 = vector.load %arg5[%c0, %c0_0] : memref<1x64xf32, #tpu.memory_space<vmem>>, vector<1x64xf32>
    %c0_1 = arith.constant 0 : index
    %c0_2 = arith.constant 0 : index
    %c0_3 = arith.constant 0 : index
    %1 = vector.load %arg1[%c0_1, %c0_2, %c0_3] : memref<1x8x32xf32, #tpu.memory_space<vmem>>, vector<1x8x32xf32>
    %2 = vector.shape_cast %1 : vector<1x8x32xf32> to vector<8x32xf32>
    %c0_4 = arith.constant 0 : index
    %c0_5 = arith.constant 0 : index
    %3 = vector.load %arg3[%c0_4, %c0_5] : memref<32x32xf32, #tpu.memory_space<vmem>>, vector<32x32xf32>
    %cst = arith.constant dense<0.000000e+00> : vector<8x32xf32>
    %4 = tpu.matmul %2, %3, %cst {dimension_numbers = #tpu.dot_dimension_numbers<[1], [0], [0], [1], [0, 0, 1, 1], [], []>} : vector<8x32xf32>, vector<32x32xf32>, vector<8x32xf32> -> vector<8x32xf32>
    %5 = vector.extract_strided_slice %0 {offsets = [0, 0], sizes = [1, 32], strides = [1, 1]} : vector<1x64xf32> to vector<1x32xf32>
    %6 = vector.broadcast %5 : vector<1x32xf32> to vector<8x32xf32>
    %7 = arith.addf %4, %6 : vector<8x32xf32>
    %c0_6 = arith.constant 0 : index
    %c0_7 = arith.constant 0 : index
    %c0_8 = arith.constant 0 : index
    %8 = vector.load %arg2[%c0_6, %c0_7, %c0_8] : memref<1x8x32xf32, #tpu.memory_space<vmem>>, vector<1x8x32xf32>
    %9 = vector.shape_cast %8 : vector<1x8x32xf32> to vector<8x32xf32>
    %c0_9 = arith.constant 0 : index
    %c0_10 = arith.constant 0 : index
    %10 = vector.load %arg4[%c0_9, %c0_10] : memref<32x32xf32, #tpu.memory_space<vmem>>, vector<32x32xf32>
    %cst_11 = arith.constant dense<0.000000e+00> : vector<8x32xf32>
    %11 = tpu.matmul %9, %10, %cst_11 {dimension_numbers = #tpu.dot_dimension_numbers<[1], [0], [0], [1], [0, 0, 1, 1], [], []>} : vector<8x32xf32>, vector<32x32xf32>, vector<8x32xf32> -> vector<8x32xf32>
    %12 = vector.extract_strided_slice %0 {offsets = [0, 32], sizes = [1, 32], strides = [1, 1]} : vector<1x64xf32> to vector<1x32xf32>
    %13 = vector.broadcast %12 : vector<1x32xf32> to vector<8x32xf32>
    %14 = arith.addf %11, %13 : vector<8x32xf32>
    %c0_12 = arith.constant 0 : index
    %c0_13 = arith.constant 0 : index
    %c0_14 = arith.constant 0 : index
    %15 = vector.load %arg6[%c0_12, %c0_13, %c0_14] : memref<1x8x32xf32, #tpu.memory_space<vmem>>, vector<1x8x32xf32>
    %16 = vector.shape_cast %15 : vector<1x8x32xf32> to vector<8x32xf32>
    %17 = vector.shape_cast %7 : vector<8x32xf32> to vector<1x8x32xf32>
    tpu.vector_store %arg6[%c0_12, %c0_13, %c0_14], %17 {strides = array<i32>} : memref<1x8x32xf32, #tpu.memory_space<vmem>>, vector<1x8x32xf32>,
    %c0_15 = arith.constant 0 : index
    %c0_16 = arith.constant 0 : index
    %c0_17 = arith.constant 0 : index
    %18 = vector.load %arg7[%c0_15, %c0_16, %c0_17] : memref<1x8x32xf32, #tpu.memory_space<vmem>>, vector<1x8x32xf32>
    %19 = vector.shape_cast %18 : vector<1x8x32xf32> to vector<8x32xf32>
    %20 = vector.shape_cast %14 : vector<8x32xf32> to vector<1x8x32xf32>
    tpu.vector_store %arg7[%c0_15, %c0_16, %c0_17], %20 {strides = array<i32>} : memref<1x8x32xf32, #tpu.memory_space<vmem>>, vector<1x8x32xf32>,
    return
  }
  func.func @transform_0(%arg0: i32) -> (i32, i32, i32) {
    %c0_i32 = arith.constant 0 : i32
    %c0_i32_0 = arith.constant 0 : i32
    %c0_i32_1 = arith.constant 0 : i32
    return %arg0, %c0_i32, %c0_i32_0 : i32, i32, i32
  }
  func.func @transform_1(%arg0: i32) -> (i32, i32, i32) {
    %c0_i32 = arith.constant 0 : i32
    %c0_i32_0 = arith.constant 0 : i32
    %c0_i32_1 = arith.constant 0 : i32
    return %arg0, %c0_i32, %c0_i32_0 : i32, i32, i32
  }
  func.func @transform_2(%arg0: i32) -> (i32, i32) {
    %c0_i32 = arith.constant 0 : i32
    %c0_i32_0 = arith.constant 0 : i32
    %c0_i32_1 = arith.constant 0 : i32
    return %c0_i32, %c0_i32_0 : i32, i32
  }
  func.func @transform_3(%arg0: i32) -> (i32, i32) {
    %c0_i32 = arith.constant 0 : i32
    %c0_i32_0 = arith.constant 0 : i32
    %c0_i32_1 = arith.constant 0 : i32
    return %c0_i32, %c0_i32_0 : i32, i32
  }
  func.func @transform_4(%arg0: i32) -> (i32, i32) {
    %c0_i32 = arith.constant 0 : i32
    %c0_i32_0 = arith.constant 0 : i32
    %c0_i32_1 = arith.constant 0 : i32
    return %c0_i32, %c0_i32_0 : i32, i32
  }
  func.func @transform_5(%arg0: i32) -> (i32, i32, i32) {
    %c0_i32 = arith.constant 0 : i32
    %c0_i32_0 = arith.constant 0 : i32
    %c0_i32_1 = arith.constant 0 : i32
    return %arg0, %c0_i32, %c0_i32_0 : i32, i32, i32
  }
  func.func @transform_6(%arg0: i32) -> (i32, i32, i32) {
    %c0_i32 = arith.constant 0 : i32
    %c0_i32_0 = arith.constant 0 : i32
    %c0_i32_1 = arith.constant 0 : i32
    return %arg0, %c0_i32, %c0_i32_0 : i32, i32, i32
  }
}

</mosaic_0001>

<llo_original>
// kernel: tpu_custom_call.1
$region0: #{tpu_custom_call.1}
  #allocation0 [shape = 'u32[]', space=smem, size = 0x4, offset = 0x4, fixed_abs, tag = 'smem constant byte address 0x4 - core index']
  #allocation1 [shape = 'u32[144,128]{1,0:T(1,128)}', space=vmem, size = 0x12000, scoped, tag = 'internal scratch']
  %s0 = inlined_call_operand.hbm [shape: f32[2,8,32], index: 0, kind: input, shape index: {}]
  %s1 = inlined_call_operand.hbm [shape: f32[2,8,32], index: 1, kind: input, shape index: {}]
  %s2 = inlined_call_operand.hbm [shape: f32[32,32], index: 2, kind: input, shape index: {}]
  %s3 = inlined_call_operand.hbm [shape: f32[32,32], index: 3, kind: input, shape index: {}]
  %s4 = inlined_call_operand.vmem [shape: f32[1,64], index: 4, kind: input, shape index: {}]
  %s5 = inlined_call_operand.hbm [shape: f32[2,8,32], index: 5, kind: output, shape index: {0}]
  %s6 = inlined_call_operand.hbm [shape: f32[2,8,32], index: 6, kind: output, shape index: {1}]
  %7 = xla_tuple %s5, %s6
  %s8 = sld [smem:[#allocation0]]
  $region77: #{tpu_custom_call.1} parent=0
    _
  %s10 = ssub.s32 1, %s8
  %s11 = scalar_select 0, %s10, %s8
  $region1: #{tpu_custom_call.1} parent=0
    #allocation2 [shape = 'u8[8192]{0}', space=vmem, size = 0x2000, scoped, tag = 'input window, operand 0']
    #allocation3 [shape = 's32[2]{0}', space=sflag, size = 0x8, scoped, tag = 'scoped memory for tpu_custom_call.1']
    #allocation4 [shape = 's32[2]{0}', space=sflag, size = 0x8, scoped, tag = 'scoped memory for tpu_custom_call.1']
    #allocation5 [shape = 'u8[8192]{0}', space=vmem, size = 0x2000, scoped, tag = 'input window, operand 1']
    #allocation6 [shape = 's32[2]{0}', space=sflag, size = 0x8, scoped, tag = 'scoped memory for tpu_custom_call.1']
    #allocation7 [shape = 'u8[16384]{0}', space=vmem, size = 0x4000, scoped, tag = 'input window, operand 2, single buffered']
    #allocation8 [shape = 'u8[16384]{0}', space=vmem, size = 0x4000, scoped, tag = 'input window, operand 3, single buffered']
    #allocation9 [shape = 's32[1]{0}', space=sflag, size = 0x4, scoped, tag = 'scoped memory for tpu_custom_call.1']
    #allocation10 [shape = 'u8[8192]{0}', space=vmem, size = 0x2000, scoped, tag = 'output window, operand 0']
    #allocation11 [shape = 'u8[8192]{0}', space=vmem, size = 0x2000, scoped, tag = 'output window, operand 1']
    #allocation12 [shape = 's32[2]{0}', space=sflag, size = 0x8, scoped, tag = 'scoped memory for tpu_custom_call.1']
    %12 = vsyncpa [#allocation3], 0
    %s13 = scalar_lea.sflag [#allocation3], 1
    %14 = vsyncpa %s13, 0
    %15 = vsyncpa [#allocation6], 0
    %s16 = scalar_lea.sflag [#allocation6], 1
    %17 = vsyncpa %s16, 0
    %18 = vsyncpa [#allocation9], 0
    %19 = vsyncpa [#allocation4], 0
    %s20 = scalar_lea.sflag [#allocation4], 1
    %21 = vsyncpa %s20, 0
    %22 = vsyncpa [#allocation12], 0
    %s23 = scalar_lea.sflag [#allocation12], 1
    %24 = vsyncpa %s23, 0
    loop: start=0, step=1, limit=4
    $region2: #{tpu_custom_call.1} parent=1 // loop_pre_header
      _
    $region3: #{tpu_custom_call.1} parent=1 // loop_header
      %s26 = sphi 0, %s30
      %p27 = scmp.ge.s32.totalorder %s26, 4
      %s36 = sphi 0, %s38
      %s39 = sphi 0, %s36
      %s40 = sphi 0, %s39
      %s56 = sphi 0, %s40
      %s62 = sphi 0, %s64
      %s65 = sphi 0, %s62
      %s66 = sphi 0, %s65
      %s82 = sphi 0, %s66
      %s86 = sphi 0, %s86
      %s88 = sphi 0, %s86
      %s89 = sphi 0, %s88
      %s103 = sphi 0, %s89
      %s107 = sphi 0, %s107
      %s109 = sphi 0, %s107
      %s110 = sphi 0, %s109
      %s124 = sphi 0, %s110
      %s128 = sphi 0, %s128
      %s130 = sphi 0, %s128
      %s131 = sphi 0, %s130
      %s145 = sphi 0, %s131
      %s151 = sphi 0, %s153
      %s154 = sphi 0, %s151
      %s155 = sphi 0, %s154
      %s171 = sphi 0, %s155
      %s177 = sphi 0, %s179
      %s180 = sphi 0, %s177
      %s181 = sphi 0, %s180
      %s197 = sphi 0, %s181
    $region4: #{tpu_custom_call.1} parent=1 // loop_header_branch
      %29 = sbr.rel (%p27) target = $region8
    $region5: #{tpu_custom_call.1} parent=1 // loop_body
      %s31 = ssub.s32 %s26, 1
      %s32 = ssub.s32 %s26, 2
      %s33 = sadd.s32 %s26, 1
      %s34 = ssub.s32 %s26, %s33
      %p35 = scmp.eq.s32.totalorder %s34, 0
      %s37 = sadd.s32 %s36, 1
      %s38 = scalar_select %p35, %s36, %s37
      %p41 = pneg %p35
      %p42 = scmp.eq.s32.totalorder %s26, 1
      %p43 = por %p41, %p42
      %p44 = scmp.ne.s32.totalorder %s36, %s39
      %p45 = scmp.eq.s32.totalorder %s26, 0
      %p46 = por %p44, %p45
      %p47 = scmp.ne.s32.totalorder %s36, %s39
      %p48 = scmp.eq.s32.totalorder %s31, 1
      %p49 = por %p47, %p48
      %p50 = scmp.ne.s32.totalorder %s39, %s40
      %p51 = scmp.eq.s32.totalorder %s31, 0
      %p52 = por %p50, %p51
      %p53 = scmp.ne.s32.totalorder %s39, %s40
      %p54 = scmp.eq.s32.totalorder %s32, 1
      %p55 = por %p53, %p54
      %p57 = scmp.ne.s32.totalorder %s40, %s56
      %p58 = scmp.eq.s32.totalorder %s32, 0
      %p59 = por %p57, %p58
      %s60 = ssub.s32 %s26, %s33
      %p61 = scmp.eq.s32.totalorder %s60, 0
      %s63 = sadd.s32 %s62, 1
      %s64 = scalar_select %p61, %s62, %s63
      %p67 = pneg %p61
      %p68 = scmp.eq.s32.totalorder %s26, 1
      %p69 = por %p67, %p68
      %p70 = scmp.ne.s32.totalorder %s62, %s65
      %p71 = scmp.eq.s32.totalorder %s26, 0
      %p72 = por %p70, %p71
      %p73 = scmp.ne.s32.totalorder %s62, %s65
      %p74 = scmp.eq.s32.totalorder %s31, 1
      %p75 = por %p73, %p74
      %p76 = scmp.ne.s32.totalorder %s65, %s66
      %p77 = scmp.eq.s32.totalorder %s31, 0
      %p78 = por %p76, %p77
      %p79 = scmp.ne.s32.totalorder %s65, %s66
      %p80 = scmp.eq.s32.totalorder %s32, 1
      %p81 = por %p79, %p80
      %p83 = scmp.ne.s32.totalorder %s66, %s82
      %p84 = scmp.eq.s32.totalorder %s32, 0
      %p85 = por %p83, %p84
      %s87 = sadd.s32 %s86, 1
      %p90 = scmp.eq.s32.totalorder %s26, 1
      %p91 = scmp.ne.s32.totalorder %s86, %s88
      %p92 = scmp.eq.s32.totalorder %s26, 0
      %p93 = por %p91, %p92
      %p94 = scmp.ne.s32.totalorder %s86, %s88
      %p95 = scmp.eq.s32.totalorder %s31, 1
      %p96 = por %p94, %p95
      %p97 = scmp.ne.s32.totalorder %s88, %s89
      %p98 = scmp.eq.s32.totalorder %s31, 0
      %p99 = por %p97, %p98
      %p100 = scmp.ne.s32.totalorder %s88, %s89
      %p101 = scmp.eq.s32.totalorder %s32, 1
      %p102 = por %p100, %p101
      %p104 = scmp.ne.s32.totalorder %s89, %s103
      %p105 = scmp.eq.s32.totalorder %s32, 0
      %p106 = por %p104, %p105
      %s108 = sadd.s32 %s107, 1
      %p111 = scmp.eq.s32.totalorder %s26, 1
      %p112 = scmp.ne.s32.totalorder %s107, %s109
      %p113 = scmp.eq.s32.totalorder %s26, 0
      %p114 = por %p112, %p113
      %p115 = scmp.ne.s32.totalorder %s107, %s109
      %p116 = scmp.eq.s32.totalorder %s31, 1
      %p117 = por %p115, %p116
      %p118 = scmp.ne.s32.totalorder %s109, %s110
      %p119 = scmp.eq.s32.totalorder %s31, 0
      %p120 = por %p118, %p119
      %p121 = scmp.ne.s32.totalorder %s109, %s110
      %p122 = scmp.eq.s32.totalorder %s32, 1
      %p123 = por %p121, %p122
      %p125 = scmp.ne.s32.totalorder %s110, %s124
      %p126 = scmp.eq.s32.totalorder %s32, 0
      %p127 = por %p125, %p126
      %s129 = sadd.s32 %s128, 1
      %p132 = scmp.eq.s32.totalorder %s26, 1
      %p133 = scmp.ne.s32.totalorder %s128, %s130
      %p134 = scmp.eq.s32.totalorder %s26, 0
      %p135 = por %p133, %p134
      %p136 = scmp.ne.s32.totalorder %s128, %s130
      %p137 = scmp.eq.s32.totalorder %s31, 1
      %p138 = por %p136, %p137
      %p139 = scmp.ne.s32.totalorder %s130, %s131
      %p140 = scmp.eq.s32.totalorder %s31, 0
      %p141 = por %p139, %p140
      %p142 = scmp.ne.s32.totalorder %s130, %s131
      %p143 = scmp.eq.s32.totalorder %s32, 1
      %p144 = por %p142, %p143
      %p146 = scmp.ne.s32.totalorder %s131, %s145
      %p147 = scmp.eq.s32.totalorder %s32, 0
      %p148 = por %p146, %p147
      %s149 = ssub.s32 %s26, %s33
      %p150 = scmp.eq.s32.totalorder %s149, 0
      %s152 = sadd.s32 %s151, 1
      %s153 = scalar_select %p150, %s151, %s152
      %p156 = pneg %p150
      %p157 = scmp.eq.s32.totalorder %s26, 1
      %p158 = por %p156, %p157
      %p159 = scmp.ne.s32.totalorder %s151, %s154
      %p160 = scmp.eq.s32.totalorder %s26, 0
      %p161 = por %p159, %p160
      %p162 = scmp.ne.s32.totalorder %s151, %s154
      %p163 = scmp.eq.s32.totalorder %s31, 1
      %p164 = por %p162, %p163
      %p165 = scmp.ne.s32.totalorder %s154, %s155
      %p166 = scmp.eq.s32.totalorder %s31, 0
      %p167 = por %p165, %p166
      %p168 = scmp.ne.s32.totalorder %s154, %s155
      %p169 = scmp.eq.s32.totalorder %s32, 1
      %p170 = por %p168, %p169
      %p172 = scmp.ne.s32.totalorder %s155, %s171
      %p173 = scmp.eq.s32.totalorder %s32, 0
      %p174 = por %p172, %p173
      %s175 = ssub.s32 %s26, %s33
      %p176 = scmp.eq.s32.totalorder %s175, 0
      %s178 = sadd.s32 %s177, 1
      %s179 = scalar_select %p176, %s177, %s178
      %p182 = pneg %p176
      %p183 = scmp.eq.s32.totalorder %s26, 1
      %p184 = por %p182, %p183
      %p185 = scmp.ne.s32.totalorder %s177, %s180
      %p186 = scmp.eq.s32.totalorder %s26, 0
      %p187 = por %p185, %p186
      %p188 = scmp.ne.s32.totalorder %s177, %s180
      %p189 = scmp.eq.s32.totalorder %s31, 1
      %p190 = por %p188, %p189
      %p191 = scmp.ne.s32.totalorder %s180, %s181
      %p192 = scmp.eq.s32.totalorder %s31, 0
      %p193 = por %p191, %p192
      %p194 = scmp.ne.s32.totalorder %s180, %s181
      %p195 = scmp.eq.s32.totalorder %s32, 1
      %p196 = por %p194, %p195
      %p198 = scmp.ne.s32.totalorder %s181, %s197
      %p199 = scmp.eq.s32.totalorder %s32, 0
      %p200 = por %p198, %p199
      %p201 = scmp.le.s32.totalorder 1, %s26
      %p202 = scmp.lt.s32.totalorder %s26, 3
      %p203 = pnand %p201, %p202
      %p204 = pneg %p203
      // Predicated region
      $region9: #{tpu_custom_call.1} parent=5 // pred_check
        _
      $region10: #{tpu_custom_call.1} parent=5 // pred_check_branch
        %206 = sbr.rel (%p203) target = $region12
      $region11: #{tpu_custom_call.1} parent=5 // pred_region
        %s207 = ssub.s32 %s26, 1
        // Predicated region
        $region13: #{tpu_custom_call.1} parent=11 // pred_check
          %p208 = pneg %p99
        $region14: #{tpu_custom_call.1} parent=11 // pred_check_branch
          %210 = sbr.rel (%p208) target = $region16
        $region15: #{tpu_custom_call.1} parent=11 // pred_region
          %s212 = ssub.s32 512, 512
          %213 = vsyncadd [#allocation6], %s212
          %s214 = sshll.u32 [#allocation7], 4
          %s215 = int_to_ptr.vmem [resolvable:$true] %s214
          %220 = dma.hbm_to_vmem [thread:$0]  %s2, 512, %s215, [#allocation6], 128, 128, 8
        $region16: #{tpu_custom_call.1} parent=11 // pred_fallthru
          _
        // Predicated region
        $region17: #{tpu_custom_call.1} parent=11 // pred_check
          %p221 = pneg %p120
        $region18: #{tpu_custom_call.1} parent=11 // pred_check_branch
          %223 = sbr.rel (%p221) target = $region20
        $region19: #{tpu_custom_call.1} parent=11 // pred_region
          %s225 = ssub.s32 512, 512
          %226 = vsyncadd [#allocation9], %s225
          %s227 = sshll.u32 [#allocation8], 4
          %s228 = int_to_ptr.vmem [resolvable:$true] %s227
          %233 = dma.hbm_to_vmem [thread:$0]  %s3, 512, %s228, [#allocation9], 128, 128, 8
        $region20: #{tpu_custom_call.1} parent=11 // pred_fallthru
          _
        // Predicated region
        $region21: #{tpu_custom_call.1} parent=11 // pred_check
          %p234 = pneg %p141
        $region22: #{tpu_custom_call.1} parent=11 // pred_check_branch
          %236 = sbr.rel (%p234) target = $region24
        $region23: #{tpu_custom_call.1} parent=11 // pred_region
          _
        $region24: #{tpu_custom_call.1} parent=11 // pred_fallthru
          _
      $region12: #{tpu_custom_call.1} parent=5 // pred_fallthru
        _
      %p237 = scmp.lt.s32.totalorder %s26, 2
      // Predicated region
      $region25: #{tpu_custom_call.1} parent=5 // pred_check
        %p238 = pneg %p237
      $region26: #{tpu_custom_call.1} parent=5 // pred_check_branch
        %240 = sbr.rel (%p238) target = $region28
      $region27: #{tpu_custom_call.1} parent=5 // pred_region
        // Predicated region
        $region29: #{tpu_custom_call.1} parent=27 // pred_check
          %p241 = pneg %p46
        $region30: #{tpu_custom_call.1} parent=27 // pred_check_branch
          %243 = sbr.rel (%p241) target = $region32
        $region31: #{tpu_custom_call.1} parent=27 // pred_region
          %s244 = sand.u32 %s36, 1
          %s245 = scalar_lea.sflag [#allocation3], %s244
          %s246 = sand.u32 %s36, 1
          %s247 = smul.addr %s246, 8
          %s248 = scalar_lea.vmem [#allocation2], %s247
          %s250 = ssub.s32 128, 128
          %251 = vsyncadd %s245, %s250
          %s252 = smul.addr %s26, 128
          %s253 = scalar_lea.hbm %s0, %s252
          %s255 = sshll.u32 %s248, 4
          %s256 = int_to_ptr.vmem [resolvable:$true] %s255
          %258 = dma.hbm_to_vmem [thread:$0]  %s253, 128, %s256, %s245
        $region32: #{tpu_custom_call.1} parent=27 // pred_fallthru
          _
        // Predicated region
        $region33: #{tpu_custom_call.1} parent=27 // pred_check
          %p259 = pneg %p72
        $region34: #{tpu_custom_call.1} parent=27 // pred_check_branch
          %261 = sbr.rel (%p259) target = $region36
        $region35: #{tpu_custom_call.1} parent=27 // pred_region
          %s262 = sand.u32 %s26, 1
          %s263 = scalar_lea.sflag [#allocation6], %s262
          %s264 = sand.u32 %s62, 1
          %s265 = smul.addr %s264, 8
          %s266 = scalar_lea.vmem [#allocation5], %s265
          %s268 = ssub.s32 128, 128
          %269 = vsyncadd %s263, %s268
          %s270 = smul.addr %s26, 128
          %s271 = scalar_lea.hbm %s1, %s270
          %s273 = sshll.u32 %s266, 4
          %s274 = int_to_ptr.vmem [resolvable:$true] %s273
          %276 = dma.hbm_to_vmem [thread:$0]  %s271, 128, %s274, %s263
        $region36: #{tpu_custom_call.1} parent=27 // pred_fallthru
          _
      $region28: #{tpu_custom_call.1} parent=5 // pred_fallthru
        _
      %p277 = scmp.le.s32.totalorder 1, %s26
      %p278 = scmp.lt.s32.totalorder %s26, 3
      %p279 = pnand %p277, %p278
      %p280 = pneg %p279
      // Predicated region
      $region37: #{tpu_custom_call.1} parent=5 // pred_check
        _
      $region38: #{tpu_custom_call.1} parent=5 // pred_check_branch
        %282 = sbr.rel (%p279) target = $region40
      $region39: #{tpu_custom_call.1} parent=5 // pred_region
        %s283 = ssub.s32 %s26, 1
        %s284 = sand.u32 %s39, 1
        %s285 = scalar_lea.sflag [#allocation3], %s284
        %s286 = sand.u32 %s39, 1
        %s287 = smul.addr %s286, 8
        %s288 = scalar_lea.vmem [#allocation2], %s287
        // Predicated region
        $region41: #{tpu_custom_call.1} parent=39 // pred_check
          %p289 = pneg %p52
        $region42: #{tpu_custom_call.1} parent=39 // pred_check_branch
          %291 = sbr.rel (%p289) target = $region44
        $region43: #{tpu_custom_call.1} parent=39 // pred_region
          %292 = dma.done %s285, 128
        $region44: #{tpu_custom_call.1} parent=39 // pred_fallthru
          _
        %s293 = sand.u32 %s31, 1
        %s294 = scalar_lea.sflag [#allocation6], %s293
        %s295 = sand.u32 %s65, 1
        %s296 = smul.addr %s295, 8
        %s297 = scalar_lea.vmem [#allocation5], %s296
        // Predicated region
        $region45: #{tpu_custom_call.1} parent=39 // pred_check
          %p298 = pneg %p78
        $region46: #{tpu_custom_call.1} parent=39 // pred_check_branch
          %300 = sbr.rel (%p298) target = $region48
        $region47: #{tpu_custom_call.1} parent=39 // pred_region
          %301 = dma.done %s294, 128
        $region48: #{tpu_custom_call.1} parent=39 // pred_fallthru
          _
        // Predicated region
        $region49: #{tpu_custom_call.1} parent=39 // pred_check
          %p302 = pneg %p99
        $region50: #{tpu_custom_call.1} parent=39 // pred_check_branch
          %304 = sbr.rel (%p302) target = $region52
        $region51: #{tpu_custom_call.1} parent=39 // pred_region
          %305 = dma.done [#allocation6], 512
        $region52: #{tpu_custom_call.1} parent=39 // pred_fallthru
          _
        // Predicated region
        $region53: #{tpu_custom_call.1} parent=39 // pred_check
          %p306 = pneg %p120
        $region54: #{tpu_custom_call.1} parent=39 // pred_check_branch
          %308 = sbr.rel (%p306) target = $region56
        $region55: #{tpu_custom_call.1} parent=39 // pred_region
          %309 = dma.done [#allocation9], 512
        $region56: #{tpu_custom_call.1} parent=39 // pred_fallthru
          _
        %s310 = sand.u32 %s39, 1
        %s311 = scalar_lea.sflag [#allocation3], %s310
        %s312 = sand.u32 %s39, 1
        %s313 = smul.addr %s312, 8
        %s314 = scalar_lea.vmem [#allocation2], %s313
        %p315 = pneg %p52
        %p316 = pneg %p49
        %s317 = sand.u32 %s31, 1
        %s318 = scalar_lea.sflag [#allocation6], %s317
        %s319 = sand.u32 %s65, 1
        %s320 = smul.addr %s319, 8
        %s321 = scalar_lea.vmem [#allocation5], %s320
        %p322 = pneg %p78
        %p323 = pneg %p75
        %p324 = pneg %p99
        %p325 = pneg %p96
        %p326 = pneg %p120
        %p327 = pneg %p117
        %p328 = pneg %p141
        %p329 = pneg %p138
        %p330 = pneg %p167
        %p331 = pneg %p164
        %s332 = sand.u32 %s154, 1
        %s333 = scalar_lea.sflag [#allocation4], %s332
        %s334 = sand.u32 %s154, 1
        %s335 = smul.addr %s334, 8
        %s336 = scalar_lea.vmem [#allocation10], %s335
        %p337 = pneg %p193
        %p338 = pneg %p190
        %s339 = sand.u32 %s180, 1
        %s340 = scalar_lea.sflag [#allocation12], %s339
        %s341 = sand.u32 %s180, 1
        %s342 = smul.addr %s341, 8
        %s343 = scalar_lea.vmem [#allocation11], %s342
        %v344 = vld [vmem:[%s4] sm:$0x1]
        %v345 = vld [vmem:[%s288] sm:$0xff]
        %v346 = vld [vmem:[#allocation7] sm:$0xff]
        %v347 = vld [vmem:[#allocation7 + $0x8] sm:$0xff]
        %v348 = vld [vmem:[#allocation7 + $0x10] sm:$0xff]
        %v349 = vld [vmem:[#allocation7 + $0x18] sm:$0xff]
        %v351 = vlaneseq
        %v352 = vshrl.u32 %v351, 7
        %v353 = vsub.s32 0, %v352
        %v354 = vrot.slane %v344, %v353
        %vm356 = vcmask 261120
        %v358 = vsel %vm356, %v345, 0
        %360 = vmatprep.subr.mxu0 0.0
        %361 = vmatpush1.msra.mxu0 0.0
        %362 = vmatprep.subr.mxu0 0.0
        %363 = vmatpush1.msra.mxu0 0.0
        %364 = vmatprep.subr.mxu0 0.0
        %365 = vmatpush1.msra.mxu0 0.0
        %366 = vmatprep.subr.mxu0 0.0
        %367 = vmatpush1.msra.mxu0 0.0
        %368 = vmatprep.subr.mxu0 0.0
        %369 = vmatpush1.msra.mxu0 0.0
        %370 = vmatprep.subr.mxu0 0.0
        %371 = vmatpush1.msra.mxu0 0.0
        %372 = vmatprep.subr.mxu0 0.0
        %373 = vmatpush1.msra.mxu0 0.0
        %374 = vmatprep.subr.mxu0 0.0
        %375 = vmatpush1.msra.mxu0 0.0
        %376 = vmatprep.subr.mxu0 0.0
        %377 = vmatpush1.msra.mxu0 0.0
        %378 = vmatprep.subr.mxu0 0.0
        %379 = vmatpush1.msra.mxu0 0.0
        %380 = vmatprep.subr.mxu0 0.0
        %381 = vmatpush1.msra.mxu0 0.0
        %382 = vmatprep.subr.mxu0 0.0
        %383 = vmatpush1.msra.mxu0 0.0
        %384 = vmatprep.subr.mxu0 0.0
        %385 = vmatpush1.msra.mxu0 %v349
        %386 = vmatprep.subr.mxu0 0.0
        %387 = vmatpush1.msra.mxu0 %v348
        %388 = vmatprep.subr.mxu0 0.0
        %389 = vmatpush1.msra.mxu0 %v347
        %390 = vmatprep.subr.mxu0 0.0
        %391 = vmatpush1.msra.mxu0 %v346
        %392 = vmatprep.subr.mxu0 0.0
        %393 = vmatpush2.msra.mxu0 0.0
        %394 = vmatprep.subr.mxu0 0.0
        %395 = vmatpush2.msra.mxu0 0.0
        %396 = vmatprep.subr.mxu0 0.0
        %397 = vmatpush2.msra.mxu0 0.0
        %398 = vmatprep.subr.mxu0 0.0
        %399 = vmatpush2.msra.mxu0 0.0
        %400 = vmatprep.subr.mxu0 0.0
        %401 = vmatpush2.msra.mxu0 0.0
        %402 = vmatprep.subr.mxu0 0.0
        %403 = vmatpush2.msra.mxu0 0.0
        %404 = vmatprep.subr.mxu0 0.0
        %405 = vmatpush2.msra.mxu0 0.0
        %406 = vmatprep.subr.mxu0 0.0
        %407 = vmatpush2.msra.mxu0 0.0
        %408 = vmatprep.subr.mxu0 0.0
        %409 = vmatpush2.msra.mxu0 0.0
        %410 = vmatprep.subr.mxu0 0.0
        %411 = vmatpush2.msra.mxu0 0.0
        %412 = vmatprep.subr.mxu0 0.0
        %413 = vmatpush2.msra.mxu0 0.0
        %414 = vmatprep.subr.mxu0 0.0
        %415 = vmatpush2.msra.mxu0 0.0
        %416 = vmatprep.subr.mxu0 0.0
        %417 = vmatpush2.msra.mxu0 0.0
        %418 = vmatprep.subr.mxu0 0.0
        %419 = vmatpush2.msra.mxu0 0.0
        %420 = vmatprep.subr.mxu0 0.0
        %421 = vmatpush2.msra.mxu0 0.0
        %422 = vmatprep.subr.mxu0 0.0
        %423 = vmatpush2.msra.mxu0 0.0
        %424 = vmatprep.mubr.f32.mxu0 0.0
        %425 = vmatmul.mubr.f32.gmra.mxu0 %v358
        %v426 = vpop.f32.mrf.mxu0
        %v427 = vadd.f32 %v354, %v426
        %v428 = vpop.f32.mrf.mxu0
        %429 = vdwg.mxu0
        %v430 = vld [vmem:[%s297] sm:$0xff]
        %v431 = vld [vmem:[#allocation8] sm:$0xff]
        %v432 = vld [vmem:[#allocation8 + $0x8] sm:$0xff]
        %v433 = vld [vmem:[#allocation8 + $0x10] sm:$0xff]
        %v434 = vld [vmem:[#allocation8 + $0x18] sm:$0xff]
        %435 = vrot.lane.b32.xlu0 %v354, 96
        %v436 = vpop.permute.xlu0 %435
        %v439 = vsel %vm356, %v430, 0
        %441 = vmatprep.subr.mxu0 0.0
        %442 = vmatpush1.msra.mxu0 0.0
        %443 = vmatprep.subr.mxu0 0.0
        %444 = vmatpush1.msra.mxu0 0.0
        %445 = vmatprep.subr.mxu0 0.0
        %446 = vmatpush1.msra.mxu0 0.0
        %447 = vmatprep.subr.mxu0 0.0
        %448 = vmatpush1.msra.mxu0 0.0
        %449 = vmatprep.subr.mxu0 0.0
        %450 = vmatpush1.msra.mxu0 0.0
        %451 = vmatprep.subr.mxu0 0.0
        %452 = vmatpush1.msra.mxu0 0.0
        %453 = vmatprep.subr.mxu0 0.0
        %454 = vmatpush1.msra.mxu0 0.0
        %455 = vmatprep.subr.mxu0 0.0
        %456 = vmatpush1.msra.mxu0 0.0
        %457 = vmatprep.subr.mxu0 0.0
        %458 = vmatpush1.msra.mxu0 0.0
        %459 = vmatprep.subr.mxu0 0.0
        %460 = vmatpush1.msra.mxu0 0.0
        %461 = vmatprep.subr.mxu0 0.0
        %462 = vmatpush1.msra.mxu0 0.0
        %463 = vmatprep.subr.mxu0 0.0
        %464 = vmatpush1.msra.mxu0 0.0
        %465 = vmatprep.subr.mxu0 0.0
        %466 = vmatpush1.msra.mxu0 %v434
        %467 = vmatprep.subr.mxu0 0.0
        %468 = vmatpush1.msra.mxu0 %v433
        %469 = vmatprep.subr.mxu0 0.0
        %470 = vmatpush1.msra.mxu0 %v432
        %471 = vmatprep.subr.mxu0 0.0
        %472 = vmatpush1.msra.mxu0 %v431
        %473 = vmatprep.subr.mxu0 0.0
        %474 = vmatpush2.msra.mxu0 0.0
        %475 = vmatprep.subr.mxu0 0.0
        %476 = vmatpush2.msra.mxu0 0.0
        %477 = vmatprep.subr.mxu0 0.0
        %478 = vmatpush2.msra.mxu0 0.0
        %479 = vmatprep.subr.mxu0 0.0
        %480 = vmatpush2.msra.mxu0 0.0
        %481 = vmatprep.subr.mxu0 0.0
        %482 = vmatpush2.msra.mxu0 0.0
        %483 = vmatprep.subr.mxu0 0.0
        %484 = vmatpush2.msra.mxu0 0.0
        %485 = vmatprep.subr.mxu0 0.0
        %486 = vmatpush2.msra.mxu0 0.0
        %487 = vmatprep.subr.mxu0 0.0
        %488 = vmatpush2.msra.mxu0 0.0
        %489 = vmatprep.subr.mxu0 0.0
        %490 = vmatpush2.msra.mxu0 0.0
        %491 = vmatprep.subr.mxu0 0.0
        %492 = vmatpush2.msra.mxu0 0.0
        %493 = vmatprep.subr.mxu0 0.0
        %494 = vmatpush2.msra.mxu0 0.0
        %495 = vmatprep.subr.mxu0 0.0
        %496 = vmatpush2.msra.mxu0 0.0
        %497 = vmatprep.subr.mxu0 0.0
        %498 = vmatpush2.msra.mxu0 0.0
        %499 = vmatprep.subr.mxu0 0.0
        %500 = vmatpush2.msra.mxu0 0.0
        %501 = vmatprep.subr.mxu0 0.0
        %502 = vmatpush2.msra.mxu0 0.0
        %503 = vmatprep.subr.mxu0 0.0
        %504 = vmatpush2.msra.mxu0 0.0
        %505 = vmatprep.mubr.f32.mxu0 0.0
        %506 = vmatmul.mubr.f32.gmra.mxu0 %v439
        %v507 = vpop.f32.mrf.mxu0
        %v508 = vadd.f32 %v436, %v507
        %v509 = vpop.f32.mrf.mxu0
        %510 = vdwg.mxu0
        %511 = vst.msk [vmem:[%s336] sm:$0xff] %vm356, %v427
        %512 = vst.msk [vmem:[%s343] sm:$0xff] %vm356, %v508
        %s513 = sand.u32 %s154, 1
        %s514 = scalar_lea.sflag [#allocation4], %s513
        %s515 = sand.u32 %s154, 1
        %s516 = smul.addr %s515, 8
        %s517 = scalar_lea.vmem [#allocation10], %s516
        %s518 = sand.u32 %s180, 1
        %s519 = scalar_lea.sflag [#allocation12], %s518
        %s520 = sand.u32 %s180, 1
        %s521 = smul.addr %s520, 8
        %s522 = scalar_lea.vmem [#allocation11], %s521
        // Predicated region
        $region57: #{tpu_custom_call.1} parent=39 // pred_check
          %p523 = pneg %p164
        $region58: #{tpu_custom_call.1} parent=39 // pred_check_branch
          %525 = sbr.rel (%p523) target = $region60
        $region59: #{tpu_custom_call.1} parent=39 // pred_region
          %s527 = ssub.s32 128, 128
          %528 = vsyncadd %s514, %s527
          %s529 = smul.addr %s31, 128
          %s530 = scalar_lea.hbm %s5, %s529
          %s532 = sshll.u32 %s517, 4
          %s533 = int_to_ptr.vmem [resolvable:$true] %s532
          %535 = dma.vmem_to_hbm [thread:$0]  %s533, 128, %s530, %s514
        $region60: #{tpu_custom_call.1} parent=39 // pred_fallthru
          _
        // Predicated region
        $region61: #{tpu_custom_call.1} parent=39 // pred_check
          %p536 = pneg %p190
        $region62: #{tpu_custom_call.1} parent=39 // pred_check_branch
          %538 = sbr.rel (%p536) target = $region64
        $region63: #{tpu_custom_call.1} parent=39 // pred_region
          %s540 = ssub.s32 128, 128
          %541 = vsyncadd %s519, %s540
          %s542 = smul.addr %s31, 128
          %s543 = scalar_lea.hbm %s6, %s542
          %s545 = sshll.u32 %s522, 4
          %s546 = int_to_ptr.vmem [resolvable:$true] %s545
          %548 = dma.vmem_to_hbm [thread:$0]  %s546, 128, %s543, %s519
        $region64: #{tpu_custom_call.1} parent=39 // pred_fallthru
          _
      $region40: #{tpu_custom_call.1} parent=5 // pred_fallthru
        _
      %p549 = scmp.le.s32.totalorder 2, %s26
      // Predicated region
      $region65: #{tpu_custom_call.1} parent=5 // pred_check
        %p550 = pneg %p549
      $region66: #{tpu_custom_call.1} parent=5 // pred_check_branch
        %552 = sbr.rel (%p550) target = $region68
      $region67: #{tpu_custom_call.1} parent=5 // pred_region
        %s553 = ssub.s32 %s26, 2
        // Predicated region
        $region69: #{tpu_custom_call.1} parent=67 // pred_check
          %p554 = pneg %p170
        $region70: #{tpu_custom_call.1} parent=67 // pred_check_branch
          %556 = sbr.rel (%p554) target = $region72
        $region71: #{tpu_custom_call.1} parent=67 // pred_region
          %s557 = sand.u32 %s155, 1
          %s558 = scalar_lea.sflag [#allocation4], %s557
          %s559 = sand.u32 %s155, 1
          %s560 = smul.addr %s559, 8
          %s561 = scalar_lea.vmem [#allocation10], %s560
          %562 = dma.done %s558, 128
        $region72: #{tpu_custom_call.1} parent=67 // pred_fallthru
          _
        // Predicated region
        $region73: #{tpu_custom_call.1} parent=67 // pred_check
          %p563 = pneg %p196
        $region74: #{tpu_custom_call.1} parent=67 // pred_check_branch
          %565 = sbr.rel (%p563) target = $region76
        $region75: #{tpu_custom_call.1} parent=67 // pred_region
          %s566 = sand.u32 %s181, 1
          %s567 = scalar_lea.sflag [#allocation12], %s566
          %s568 = sand.u32 %s181, 1
          %s569 = smul.addr %s568, 8
          %s570 = scalar_lea.vmem [#allocation11], %s569
          %571 = dma.done %s567, 128
        $region76: #{tpu_custom_call.1} parent=67 // pred_fallthru
          _
      $region68: #{tpu_custom_call.1} parent=5 // pred_fallthru
        _
    $region6: #{tpu_custom_call.1} parent=1 // loop_footer
      %s30 = sadd.s32 1, %s26
    $region7: #{tpu_custom_call.1} parent=1 // loop_footer_branch
      %25 = sbr.rel target = $region3
    $region8: #{tpu_custom_call.1} parent=1 // loop_exit
      _
    %572 = vsyncpa [#allocation3], 1
    %s573 = scalar_lea.sflag [#allocation3], 1
    %574 = vsyncpa %s573, 1
    %575 = vsyncpa [#allocation6], 1
    %s576 = scalar_lea.sflag [#allocation6], 1
    %577 = vsyncpa %s576, 1
    %578 = vsyncpa [#allocation9], 1
    %579 = vsyncpa [#allocation4], 1
    %s580 = scalar_lea.sflag [#allocation4], 1
    %581 = vsyncpa %s580, 1
    %582 = vsyncpa [#allocation12], 1
    %s583 = scalar_lea.sflag [#allocation12], 1
    %584 = vsyncpa %s583, 1

</llo_original>
